<compile_context>
chip_gen: v5e
topology: v5e:2x2
jax: 0.10.0
libtpu: 0.0.40
codegen_flags: <defaults>
</compile_context>

<pallas_src>
import jax
import jax.numpy as jnp
from jax.experimental import pallas as pl
from jax.experimental.pallas import tpu as pltpu

H1, H2 = 400, 300      # true hidden sizes from the PyTorch module
H1P, H2P = 512, 384    # lane-padded hidden sizes (multiples of 128)
TB_MAX = 1024          # batch-tile cap (safe for v7x 32 MiB scoped VMEM)


def _cdiv(a, b):
    return (a + b - 1) // b


def _round_up(n, m):
    return _cdiv(n, m) * m


def _choose_tiling(B):
    """Even grid (>=2 steps, feeds both v7x TCs), TB multiple of 8, minimal
    batch-pad waste, TB capped so f32 intermediates stay small in VMEM."""
    n_steps = max(2, _cdiv(B, TB_MAX))
    if n_steps % 2:
        n_steps += 1
    tb = _round_up(_cdiv(B, n_steps), 8)
    n_steps = max(2, _cdiv(B, tb))          # can only shrink
    if n_steps % 2:
        n_steps += 1
    return tb, n_steps


def critic_kernel(x_ref, u_ref, w1_ref, b1_ref, w2h_ref, w2u_ref, b2_ref,
                  w3_ref, b3_ref, o_ref):
    # ---- layer1: (TB, xDim) @ (xDim, H1P) on the MXU (bf16 ops, f32 acc).
    x_bf = x_ref[...].astype(jnp.bfloat16)
    z1 = jnp.dot(x_bf, w1_ref[...], preferred_element_type=jnp.float32)
    h1 = jnp.maximum(z1 + b1_ref[...], 0.0)                    # f32 epilogue

    # ---- layer2 main branch: (TB, H1P) @ (H1P, H2P) on the MXU.
    acc = jnp.dot(h1.astype(jnp.bfloat16), w2h_ref[...],
                  preferred_element_type=jnp.float32)
    acc = acc + b2_ref[...]

    # ---- layer2 u-branch: K = uDim is tiny -> uDim broadcast FMAs on the
    # VPU (idle VALU slots) instead of a wasteful extra MXU pass.
    u = u_ref[...]                                             # (TB, uDim) f32
    w2u = w2u_ref[...]                                         # (uDim, H2P) f32
    for k in range(u_ref.shape[1]):                            # static unroll
        acc = acc + u[:, k:k + 1] * w2u[k:k + 1, :]
    h2 = jnp.maximum(acc, 0.0)

    # ---- layer3 (out_features == 1): VPU multiply + lane reduce (no N=1 MXU
    # matmul).  Result is a (TB,) vector stored lane-dense as one (1,1,TB) row.
    y = jnp.sum(h2 * w3_ref[...], axis=1) + b3_ref[0]
    o_ref[0, 0, :] = jnp.maximum(y, 0.0)


def init_params(key, xDim, uDim):
    """Deterministic init matching the PyTorch module's shapes / init ranges.

    layer1: Linear(xDim, 400)      fanin_init -> U(-1/sqrt(xDim), 1/sqrt(xDim))
    layer2: Linear(400+uDim, 300)  fanin_init -> U(-1/sqrt(400+uDim), ...)
    layer3: Linear(300, 1)         U(-0.003, 0.003)
    Weights stored transposed (in, out) so the kernel does y = x @ W + b.
    """
    k1, k2, k3, k4, k5, k6 = jax.random.split(key, 6)
    f1 = 1.0 / jnp.sqrt(xDim)
    f2 = 1.0 / jnp.sqrt(H1 + uDim)
    f3 = 0.003
    return {
        "w1": jax.random.uniform(k1, (xDim, H1), jnp.float32, -f1, f1),
        "b1": jax.random.uniform(k2, (H1,), jnp.float32, -f1, f1),
        "w2": jax.random.uniform(k3, (H1 + uDim, H2), jnp.float32, -f2, f2),
        "b2": jax.random.uniform(k4, (H2,), jnp.float32, -f2, f2),
        "w3": jax.random.uniform(k5, (H2, 1), jnp.float32, -f3, f3),
        "b3": jax.random.uniform(k6, (1,), jnp.float32, -f3, f3),
    }


def pack_params(params, xDim, uDim):
    """Pad hidden dims to lane multiples (zeros are exactly neutral through
    bias/relu/matmul/reduce), cast the two MXU weights to bf16, keep the VPU
    operands (u-branch weight, biases, w3 row) in f32.  Done once."""
    w1, b1, w2, b2, w3, b3 = (params[k] for k in
                              ("w1", "b1", "w2", "b2", "w3", "b3"))
    w2h, w2u = w2[:H1], w2[H1:]          # (400, 300), (uDim, 300)

    w1p = (jnp.zeros((xDim, H1P), jnp.float32).at[:, :H1].set(w1)
           .astype(jnp.bfloat16))
    w2hp = (jnp.zeros((H1P, H2P), jnp.float32).at[:H1, :H2].set(w2h)
            .astype(jnp.bfloat16))
    w2up = jnp.zeros((uDim, H2P), jnp.float32).at[:, :H2].set(w2u)  # VPU: f32
    b1p = jnp.zeros((1, H1P), jnp.float32).at[:, :H1].set(b1)
    b2p = jnp.zeros((1, H2P), jnp.float32).at[:, :H2].set(b2)
    w3row = jnp.zeros((1, H2P), jnp.float32).at[:, :H2].set(w3[:, 0])
    b3v = b3.reshape(1).astype(jnp.float32)                         # SMEM scalar
    return (w1p, b1p, w2hp, w2up, b2p, w3row, b3v)


def critic_forward(x, u, packed):
    """x: (B, xDim) f32, u: (B, uDim) f32 -> (B, 1) f32."""
    w1p, b1p, w2hp, w2up, b2p, w3row, b3v = packed
    B, xDim = x.shape
    uDim = u.shape[1]

    TB, n_steps = _choose_tiling(B)
    Bp = TB * n_steps
    if Bp != B:   # only pads when the adaptive tiling actually requires it
        x = jnp.pad(x, ((0, Bp - B), (0, 0)))
        u = jnp.pad(u, ((0, Bp - B), (0, 0)))

    out = pl.pallas_call(
        critic_kernel,
        # Lane-dense output: one (1, TB) row per grid step.
        out_shape=jax.ShapeDtypeStruct((n_steps, 1, TB), jnp.float32),
        grid_spec=pltpu.PrefetchScalarGridSpec(
            num_scalar_prefetch=0,
            grid=(n_steps,),
            in_specs=[
                pl.BlockSpec((TB, xDim), lambda i: (i, 0)),           # x tile
                pl.BlockSpec((TB, uDim), lambda i: (i, 0)),           # u tile
                pl.BlockSpec((xDim, H1P), lambda i: (0, 0)),          # w1 (bf16)
                pl.BlockSpec((1, H1P), lambda i: (0, 0)),             # b1
                pl.BlockSpec((H1P, H2P), lambda i: (0, 0)),           # w2h (bf16)
                pl.BlockSpec((uDim, H2P), lambda i: (0, 0)),          # w2u (f32)
                pl.BlockSpec((1, H2P), lambda i: (0, 0)),             # b2
                pl.BlockSpec((1, H2P), lambda i: (0, 0)),             # w3 row
                pl.BlockSpec(memory_space=pltpu.MemorySpace.SMEM),    # b3 scalar
            ],
            out_specs=pl.BlockSpec((1, 1, TB), lambda i: (i, 0, 0)),
        ),
        compiler_params=pltpu.CompilerParams(
            dimension_semantics=("parallel",)),
    )(x, u, w1p, b1p, w2hp, w2up, b2p, w3row, b3v)

    # (n_steps, 1, TB) -> (Bp,) is a free row-major reshape; slice off pad rows.
    return out.reshape(-1)[:B].reshape(B, 1)


def critic_ref(x, u, params):
    """Pure-JAX f32 reference mirroring the PyTorch forward."""
    h1 = jax.nn.relu(x @ params["w1"] + params["b1"])
    h2_in = jnp.concatenate((h1, u), axis=1)
    h2 = jax.nn.relu(h2_in @ params["w2"] + params["b2"])
    return jax.nn.relu(h2 @ params["w3"] + params["b3"])


def critic_ref_bf16(x, u, params):
    """Reference with the same bf16-MXU / f32-VPU structure as the kernel
    (tight numerical check of the kernel)."""
    bf = jnp.bfloat16
    h1 = jax.nn.relu(
        jnp.dot(x.astype(bf), params["w1"].astype(bf),
                preferred_element_type=jnp.float32) + params["b1"])
    w2h = params["w2"][:H1].astype(bf)
    w2u = params["w2"][H1:]                       # f32 (VPU branch in kernel)
    acc = jnp.dot(h1.astype(bf), w2h,
                  preferred_element_type=jnp.float32) + params["b2"]
    for k in range(u.shape[1]):
        acc = acc + u[:, k:k + 1] * w2u[k:k + 1, :]
    h2 = jax.nn.relu(acc)
    y = jnp.sum(h2 * params["w3"][:, 0], axis=-1, keepdims=True) + params["b3"]
    return jax.nn.relu(y)


if __name__ == "__main__":
    xDim, uDim = 16, 4
    key = jax.random.PRNGKey(0)
    kp, kdata = jax.random.split(key)

    params = init_params(kp, xDim, uDim)
    packed = pack_params(params, xDim, uDim)

    # B=8: tiny-batch path (2 steps of TB=8, padded to 16).
    # B=520: previously padded to 1024 (49% waste) -> now 2 steps of 264.
    # B=1040: previously padded to 1536 -> now exactly 2 steps of 520.
    for B in (8, 520, 1040):
        kx, ku = jax.random.split(jax.random.fold_in(kdata, B))
        x = jax.random.normal(kx, (B, xDim), jnp.float32)
        u = jax.random.normal(ku, (B, uDim), jnp.float32)

        y = jax.block_until_ready(critic_forward(x, u, packed))
        assert y.shape == (B, 1), y.shape

        # Tight check vs. a reference with identical casting / add ordering.
        y_bf = critic_ref_bf16(x, u, params)
        assert jnp.allclose(y, y_bf, atol=3e-5, rtol=1e-4), (
            "bf16-matched mismatch", float(jnp.abs(y - y_bf).max()))

        # Loose sanity check vs. exact f32 PyTorch-equivalent math
        # (tolerance accounts for bf16 MXU operand rounding).
        y_f32 = critic_ref(x, u, params)
        assert jnp.allclose(y, y_f32, atol=2e-3, rtol=1e-1), (
            "f32 reference mismatch", float(jnp.abs(y - y_f32).max()))

    print("KERNEL_OK")
</pallas_src>

<mosaic_0001>
module attributes {stable_mosaic.version = 11 : i64} {
  func.func @critic_kernel(%arg0: i32, %arg1: memref<8x16xf32, #tpu.memory_space<vmem>>, %arg2: memref<8x4xf32, #tpu.memory_space<vmem>>, %arg3: memref<16x512xbf16, #tpu.memory_space<vmem>>, %arg4: memref<1x512xf32, #tpu.memory_space<vmem>>, %arg5: memref<512x384xbf16, #tpu.memory_space<vmem>>, %arg6: memref<4x384xf32, #tpu.memory_space<vmem>>, %arg7: memref<1x384xf32, #tpu.memory_space<vmem>>, %arg8: memref<1x384xf32, #tpu.memory_space<vmem>>, %arg9: memref<1xf32, #tpu.memory_space<smem>>, %arg10: memref<1x1x8xf32, #tpu.memory_space<vmem>>) attributes {dimension_semantics = [#tpu.dimension_semantics<parallel>], iteration_bounds = array<i64: 2>, scalar_prefetch = 0 : i64, scratch_operands = 0 : i64, tpu.core_type = #tpu.core_type<tc>, window_params = [{transform_indices = @transform_0, window_bounds = array<i64: 8, 16>}, {transform_indices = @transform_1, window_bounds = array<i64: 8, 4>}, {pipeline_mode = #tpu.pipeline_mode<synchronous>, transform_indices = @transform_2, window_bounds = array<i64: 16, 512>}, {pipeline_mode = #tpu.pipeline_mode<synchronous>, transform_indices = @transform_3, window_bounds = array<i64: 1, 512>}, {pipeline_mode = #tpu.pipeline_mode<synchronous>, transform_indices = @transform_4, window_bounds = array<i64: 512, 384>}, {pipeline_mode = #tpu.pipeline_mode<synchronous>, transform_indices = @transform_5, window_bounds = array<i64: 4, 384>}, {pipeline_mode = #tpu.pipeline_mode<synchronous>, transform_indices = @transform_6, window_bounds = array<i64: 1, 384>}, {pipeline_mode = #tpu.pipeline_mode<synchronous>, transform_indices = @transform_7, window_bounds = array<i64: 1, 384>}, {transform_indices = @transform_8, window_bounds = array<i64: 1>}, {transform_indices = @transform_9, window_bounds = array<i64: 1, 1, 8>}]} {
    %c0 = arith.constant 0 : index
    %c0_0 = arith.constant 0 : index
    %0 = vector.load %arg1[%c0, %c0_0] : memref<8x16xf32, #tpu.memory_space<vmem>>, vector<8x16xf32>
    %1 = arith.truncf %0 : vector<8x16xf32> to vector<8x16xbf16>
    %c0_1 = arith.constant 0 : index
    %c0_2 = arith.constant 0 : index
    %2 = vector.load %arg3[%c0_1, %c0_2] : memref<16x512xbf16, #tpu.memory_space<vmem>>, vector<16x512xbf16>
    %cst = arith.constant dense<0.000000e+00> : vector<8x512xf32>
    %3 = tpu.matmul %1, %2, %cst {dimension_numbers = #tpu.dot_dimension_numbers<[1], [0], [0], [1], [0, 0, 1, 1], [], []>} : vector<8x16xbf16>, vector<16x512xbf16>, vector<8x512xf32> -> vector<8x512xf32>
    %c0_3 = arith.constant 0 : index
    %c0_4 = arith.constant 0 : index
    %4 = vector.load %arg4[%c0_3, %c0_4] : memref<1x512xf32, #tpu.memory_space<vmem>>, vector<1x512xf32>
    %5 = vector.broadcast %4 : vector<1x512xf32> to vector<8x512xf32>
    %6 = arith.addf %3, %5 : vector<8x512xf32>
    %cst_5 = arith.constant 0.000000e+00 : f32
    %7 = vector.broadcast %cst_5 : f32 to vector<8x512xf32>
    %8 = arith.maximumf %6, %7 : vector<8x512xf32>
    %9 = arith.truncf %8 : vector<8x512xf32> to vector<8x512xbf16>
    %c0_6 = arith.constant 0 : index
    %c0_7 = arith.constant 0 : index
    %10 = vector.load %arg5[%c0_6, %c0_7] : memref<512x384xbf16, #tpu.memory_space<vmem>>, vector<512x384xbf16>
    %cst_8 = arith.constant dense<0.000000e+00> : vector<8x384xf32>
    %11 = tpu.matmul %9, %10, %cst_8 {dimension_numbers = #tpu.dot_dimension_numbers<[1], [0], [0], [1], [0, 0, 1, 1], [], []>} : vector<8x512xbf16>, vector<512x384xbf16>, vector<8x384xf32> -> vector<8x384xf32>
    %c0_9 = arith.constant 0 : index
    %c0_10 = arith.constant 0 : index
    %12 = vector.load %arg7[%c0_9, %c0_10] : memref<1x384xf32, #tpu.memory_space<vmem>>, vector<1x384xf32>
    %13 = vector.broadcast %12 : vector<1x384xf32> to vector<8x384xf32>
    %14 = arith.addf %11, %13 : vector<8x384xf32>
    %c0_11 = arith.constant 0 : index
    %c0_12 = arith.constant 0 : index
    %15 = vector.load %arg2[%c0_11, %c0_12] : memref<8x4xf32, #tpu.memory_space<vmem>>, vector<8x4xf32>
    %c0_13 = arith.constant 0 : index
    %c0_14 = arith.constant 0 : index
    %16 = vector.load %arg6[%c0_13, %c0_14] : memref<4x384xf32, #tpu.memory_space<vmem>>, vector<4x384xf32>
    %17 = vector.extract_strided_slice %15 {offsets = [0, 0], sizes = [8, 1], strides = [1, 1]} : vector<8x4xf32> to vector<8x1xf32>
    %18 = vector.extract_strided_slice %16 {offsets = [0, 0], sizes = [1, 384], strides = [1, 1]} : vector<4x384xf32> to vector<1x384xf32>
    %19 = vector.broadcast %17 : vector<8x1xf32> to vector<8x384xf32>
    %20 = vector.broadcast %18 : vector<1x384xf32> to vector<8x384xf32>
    %21 = arith.mulf %19, %20 : vector<8x384xf32>
    %22 = arith.addf %14, %21 : vector<8x384xf32>
    %23 = vector.extract_strided_slice %15 {offsets = [0, 1], sizes = [8, 1], strides = [1, 1]} : vector<8x4xf32> to vector<8x1xf32>
    %24 = vector.extract_strided_slice %16 {offsets = [1, 0], sizes = [1, 384], strides = [1, 1]} : vector<4x384xf32> to vector<1x384xf32>
    %25 = vector.broadcast %23 : vector<8x1xf32> to vector<8x384xf32>
    %26 = vector.broadcast %24 : vector<1x384xf32> to vector<8x384xf32>
    %27 = arith.mulf %25, %26 : vector<8x384xf32>
    %28 = arith.addf %22, %27 : vector<8x384xf32>
    %29 = vector.extract_strided_slice %15 {offsets = [0, 2], sizes = [8, 1], strides = [1, 1]} : vector<8x4xf32> to vector<8x1xf32>
    %30 = vector.extract_strided_slice %16 {offsets = [2, 0], sizes = [1, 384], strides = [1, 1]} : vector<4x384xf32> to vector<1x384xf32>
    %31 = vector.broadcast %29 : vector<8x1xf32> to vector<8x384xf32>
    %32 = vector.broadcast %30 : vector<1x384xf32> to vector<8x384xf32>
    %33 = arith.mulf %31, %32 : vector<8x384xf32>
    %34 = arith.addf %28, %33 : vector<8x384xf32>
    %35 = vector.extract_strided_slice %15 {offsets = [0, 3], sizes = [8, 1], strides = [1, 1]} : vector<8x4xf32> to vector<8x1xf32>
    %36 = vector.extract_strided_slice %16 {offsets = [3, 0], sizes = [1, 384], strides = [1, 1]} : vector<4x384xf32> to vector<1x384xf32>
    %37 = vector.broadcast %35 : vector<8x1xf32> to vector<8x384xf32>
    %38 = vector.broadcast %36 : vector<1x384xf32> to vector<8x384xf32>
    %39 = arith.mulf %37, %38 : vector<8x384xf32>
    %40 = arith.addf %34, %39 : vector<8x384xf32>
    %cst_15 = arith.constant 0.000000e+00 : f32
    %41 = vector.broadcast %cst_15 : f32 to vector<8x384xf32>
    %42 = arith.maximumf %40, %41 : vector<8x384xf32>
    %c0_16 = arith.constant 0 : index
    %c0_17 = arith.constant 0 : index
    %43 = vector.load %arg8[%c0_16, %c0_17] : memref<1x384xf32, #tpu.memory_space<vmem>>, vector<1x384xf32>
    %44 = vector.broadcast %43 : vector<1x384xf32> to vector<8x384xf32>
    %45 = arith.mulf %42, %44 : vector<8x384xf32>
    %cst_18 = arith.constant dense<0.000000e+00> : vector<8xf32>
    %46 = vector.multi_reduction <add>, %45, %cst_18 [1] : vector<8x384xf32> to vector<8xf32>
    %c0_19 = arith.constant 0 : index
    %47 = memref.load %arg9[%c0_19] : memref<1xf32, #tpu.memory_space<smem>>
    %48 = vector.broadcast %47 : f32 to vector<8xf32>
    %49 = arith.addf %46, %48 : vector<8xf32>
    %cst_20 = arith.constant 0.000000e+00 : f32
    %50 = vector.broadcast %cst_20 : f32 to vector<8xf32>
    %51 = arith.maximumf %49, %50 : vector<8xf32>
    %c0_21 = arith.constant 0 : index
    %c0_22 = arith.constant 0 : index
    %c0_23 = arith.constant 0 : index
    %52 = vector.load %arg10[%c0_21, %c0_22, %c0_23] : memref<1x1x8xf32, #tpu.memory_space<vmem>>, vector<1x1x8xf32>
    %53 = vector.shape_cast %52 : vector<1x1x8xf32> to vector<8xf32>
    %54 = vector.shape_cast %51 : vector<8xf32> to vector<1x1x8xf32>
    tpu.vector_store %arg10[%c0_21, %c0_22, %c0_23], %54 {strides = array<i32>} : memref<1x1x8xf32, #tpu.memory_space<vmem>>, vector<1x1x8xf32>,
    return
  }
  func.func @transform_0(%arg0: i32) -> (i32, i32) {
    %c0_i32 = arith.constant 0 : i32
    %c0_i32_0 = arith.constant 0 : i32
    return %arg0, %c0_i32 : i32, i32
  }
  func.func @transform_1(%arg0: i32) -> (i32, i32) {
    %c0_i32 = arith.constant 0 : i32
    %c0_i32_0 = arith.constant 0 : i32
    return %arg0, %c0_i32 : i32, i32
  }
  func.func @transform_2(%arg0: i32) -> (i32, i32) {
    %c0_i32 = arith.constant 0 : i32
    %c0_i32_0 = arith.constant 0 : i32
    %c0_i32_1 = arith.constant 0 : i32
    return %c0_i32, %c0_i32_0 : i32, i32
  }
  func.func @transform_3(%arg0: i32) -> (i32, i32) {
    %c0_i32 = arith.constant 0 : i32
    %c0_i32_0 = arith.constant 0 : i32
    %c0_i32_1 = arith.constant 0 : i32
    return %c0_i32, %c0_i32_0 : i32, i32
  }
  func.func @transform_4(%arg0: i32) -> (i32, i32) {
    %c0_i32 = arith.constant 0 : i32
    %c0_i32_0 = arith.constant 0 : i32
    %c0_i32_1 = arith.constant 0 : i32
    return %c0_i32, %c0_i32_0 : i32, i32
  }
  func.func @transform_5(%arg0: i32) -> (i32, i32) {
    %c0_i32 = arith.constant 0 : i32
    %c0_i32_0 = arith.constant 0 : i32
    %c0_i32_1 = arith.constant 0 : i32
    return %c0_i32, %c0_i32_0 : i32, i32
  }
  func.func @transform_6(%arg0: i32) -> (i32, i32) {
    %c0_i32 = arith.constant 0 : i32
    %c0_i32_0 = arith.constant 0 : i32
    %c0_i32_1 = arith.constant 0 : i32
    return %c0_i32, %c0_i32_0 : i32, i32
  }
  func.func @transform_7(%arg0: i32) -> (i32, i32) {
    %c0_i32 = arith.constant 0 : i32
    %c0_i32_0 = arith.constant 0 : i32
    %c0_i32_1 = arith.constant 0 : i32
    return %c0_i32, %c0_i32_0 : i32, i32
  }
  func.func @transform_8(%arg0: i32) -> i32 {
    %c0_i32 = arith.constant 0 : i32
    %c0_i32_0 = arith.constant 0 : i32
    return %c0_i32 : i32
  }
  func.func @transform_9(%arg0: i32) -> (i32, i32, i32) {
    %c0_i32 = arith.constant 0 : i32
    %c0_i32_0 = arith.constant 0 : i32
    %c0_i32_1 = arith.constant 0 : i32
    return %arg0, %c0_i32, %c0_i32_0 : i32, i32, i32
  }
}

</mosaic_0001>

<llo_original>
// kernel: tpu_custom_call.1
$region0: #{tpu_custom_call.1}
  #allocation0 [shape = 'u32[]', space=smem, size = 0x4, offset = 0x4, fixed_abs, tag = 'smem constant byte address 0x4 - core index']
  #allocation1 [shape = 'u32[72,128]{1,0:T(1,128)}', space=vmem, size = 0x9000, scoped, tag = 'internal scratch']
  #allocation2 [shape = 'f32[1]{0:T(128)S(6)}', space=smem, size = 0x200, scoped, tag = 'scoped memory for tpu_custom_call.1']
  %s0 = inlined_call_operand.vmem [shape: f32[16,16], index: 0, kind: input, shape index: {}]
  %s1 = inlined_call_operand.vmem [shape: f32[16,4], index: 1, kind: input, shape index: {}]
  %s2 = inlined_call_operand.hbm [shape: bf16[16,512], index: 2, kind: input, shape index: {}]
  %s3 = inlined_call_operand.vmem [shape: f32[1,512], index: 3, kind: input, shape index: {}]
  %s4 = inlined_call_operand.hbm [shape: bf16[512,384], index: 4, kind: input, shape index: {}]
  %s5 = inlined_call_operand.hbm [shape: f32[4,384], index: 5, kind: input, shape index: {}]
  %s6 = inlined_call_operand.vmem [shape: f32[1,384], index: 6, kind: input, shape index: {}]
  %s7 = inlined_call_operand.vmem [shape: f32[1,384], index: 7, kind: input, shape index: {}]
  %s8 = inlined_call_operand.<no memory space> [shape: f32[1], index: 8, kind: input, shape index: {}]
  %s9 = inlined_call_operand.hbm [shape: f32[2,1,8], index: 9, kind: output, shape index: {}]
  %s10 = sld [smem:[#allocation0]]
  $region81: #{tpu_custom_call.1} parent=0
    _
  %s12 = ssub.s32 1, %s10
  %s13 = scalar_select 0, %s12, %s10
  %14 = sst [smem:[#allocation2]] %s8
  $region1: #{tpu_custom_call.1} parent=0
    #allocation3 [shape = 'u8[16384]{0}', space=vmem, size = 0x4000, scoped, tag = 'input window, operand 2, single buffered']
    #allocation4 [shape = 's32[2]{0}', space=sflag, size = 0x8, scoped, tag = 'scoped memory for tpu_custom_call.1']
    #allocation5 [shape = 's32[2]{0}', space=sflag, size = 0x8, scoped, tag = 'scoped memory for tpu_custom_call.1']
    #allocation6 [shape = 'u8[393216]{0}', space=vmem, size = 0x60000, scoped, tag = 'input window, operand 4, single buffered']
    #allocation7 [shape = 's32[1]{0}', space=sflag, size = 0x4, scoped, tag = 'scoped memory for tpu_custom_call.1']
    #allocation8 [shape = 'u8[6144]{0}', space=vmem, size = 0x1800, scoped, tag = 'input window, operand 5, single buffered']
    #allocation9 [shape = 'u8[1024]{0}', space=vmem, size = 0x400, scoped, tag = 'output window, operand 0']
    %15 = vsyncpa [#allocation4], 0
    %16 = vsyncpa [#allocation7], 0
    %17 = vsyncpa [#allocation5], 0
    %s18 = scalar_lea.sflag [#allocation5], 1
    %19 = vsyncpa %s18, 0
    loop: start=0, step=1, limit=4
    $region2: #{tpu_custom_call.1} parent=1 // loop_pre_header
      _
    $region3: #{tpu_custom_call.1} parent=1 // loop_header
      %s21 = sphi 0, %s25
      %p22 = scmp.ge.s32.totalorder %s21, 4
      %s31 = sphi 0, %s33
      %s34 = sphi 0, %s31
      %s35 = sphi 0, %s34
      %s51 = sphi 0, %s35
      %s57 = sphi 0, %s59
      %s60 = sphi 0, %s57
      %s61 = sphi 0, %s60
      %s77 = sphi 0, %s61
      %s81 = sphi 0, %s81
      %s83 = sphi 0, %s81
      %s84 = sphi 0, %s83
      %s98 = sphi 0, %s84
      %s102 = sphi 0, %s102
      %s104 = sphi 0, %s102
      %s105 = sphi 0, %s104
      %s119 = sphi 0, %s105
      %s123 = sphi 0, %s123
      %s125 = sphi 0, %s123
      %s126 = sphi 0, %s125
      %s140 = sphi 0, %s126
      %s144 = sphi 0, %s144
      %s146 = sphi 0, %s144
      %s147 = sphi 0, %s146
      %s161 = sphi 0, %s147
      %s165 = sphi 0, %s165
      %s167 = sphi 0, %s165
      %s168 = sphi 0, %s167
      %s182 = sphi 0, %s168
      %s186 = sphi 0, %s186
      %s188 = sphi 0, %s186
      %s189 = sphi 0, %s188
      %s203 = sphi 0, %s189
      %s207 = sphi 0, %s207
      %s209 = sphi 0, %s207
      %s210 = sphi 0, %s209
      %s224 = sphi 0, %s210
      %s230 = sphi 0, %s232
      %s233 = sphi 0, %s230
      %s234 = sphi 0, %s233
      %s250 = sphi 0, %s234
    $region4: #{tpu_custom_call.1} parent=1 // loop_header_branch
      %24 = sbr.rel (%p22) target = $region8
    $region5: #{tpu_custom_call.1} parent=1 // loop_body
      %s26 = ssub.s32 %s21, 1
      %s27 = ssub.s32 %s21, 2
      %s28 = sadd.s32 %s21, 1
      %s29 = ssub.s32 %s21, %s28
      %p30 = scmp.eq.s32.totalorder %s29, 0
      %s32 = sadd.s32 %s31, 1
      %s33 = scalar_select %p30, %s31, %s32
      %p36 = pneg %p30
      %p37 = scmp.eq.s32.totalorder %s21, 1
      %p38 = por %p36, %p37
      %p39 = scmp.ne.s32.totalorder %s31, %s34
      %p40 = scmp.eq.s32.totalorder %s21, 0
      %p41 = por %p39, %p40
      %p42 = scmp.ne.s32.totalorder %s31, %s34
      %p43 = scmp.eq.s32.totalorder %s26, 1
      %p44 = por %p42, %p43
      %p45 = scmp.ne.s32.totalorder %s34, %s35
      %p46 = scmp.eq.s32.totalorder %s26, 0
      %p47 = por %p45, %p46
      %p48 = scmp.ne.s32.totalorder %s34, %s35
      %p49 = scmp.eq.s32.totalorder %s27, 1
      %p50 = por %p48, %p49
      %p52 = scmp.ne.s32.totalorder %s35, %s51
      %p53 = scmp.eq.s32.totalorder %s27, 0
      %p54 = por %p52, %p53
      %s55 = ssub.s32 %s21, %s28
      %p56 = scmp.eq.s32.totalorder %s55, 0
      %s58 = sadd.s32 %s57, 1
      %s59 = scalar_select %p56, %s57, %s58
      %p62 = pneg %p56
      %p63 = scmp.eq.s32.totalorder %s21, 1
      %p64 = por %p62, %p63
      %p65 = scmp.ne.s32.totalorder %s57, %s60
      %p66 = scmp.eq.s32.totalorder %s21, 0
      %p67 = por %p65, %p66
      %p68 = scmp.ne.s32.totalorder %s57, %s60
      %p69 = scmp.eq.s32.totalorder %s26, 1
      %p70 = por %p68, %p69
      %p71 = scmp.ne.s32.totalorder %s60, %s61
      %p72 = scmp.eq.s32.totalorder %s26, 0
      %p73 = por %p71, %p72
      %p74 = scmp.ne.s32.totalorder %s60, %s61
      %p75 = scmp.eq.s32.totalorder %s27, 1
      %p76 = por %p74, %p75
      %p78 = scmp.ne.s32.totalorder %s61, %s77
      %p79 = scmp.eq.s32.totalorder %s27, 0
      %p80 = por %p78, %p79
      %s82 = sadd.s32 %s81, 1
      %p85 = scmp.eq.s32.totalorder %s21, 1
      %p86 = scmp.ne.s32.totalorder %s81, %s83
      %p87 = scmp.eq.s32.totalorder %s21, 0
      %p88 = por %p86, %p87
      %p89 = scmp.ne.s32.totalorder %s81, %s83
      %p90 = scmp.eq.s32.totalorder %s26, 1
      %p91 = por %p89, %p90
      %p92 = scmp.ne.s32.totalorder %s83, %s84
      %p93 = scmp.eq.s32.totalorder %s26, 0
      %p94 = por %p92, %p93
      %p95 = scmp.ne.s32.totalorder %s83, %s84
      %p96 = scmp.eq.s32.totalorder %s27, 1
      %p97 = por %p95, %p96
      %p99 = scmp.ne.s32.totalorder %s84, %s98
      %p100 = scmp.eq.s32.totalorder %s27, 0
      %p101 = por %p99, %p100
      %s103 = sadd.s32 %s102, 1
      %p106 = scmp.eq.s32.totalorder %s21, 1
      %p107 = scmp.ne.s32.totalorder %s102, %s104
      %p108 = scmp.eq.s32.totalorder %s21, 0
      %p109 = por %p107, %p108
      %p110 = scmp.ne.s32.totalorder %s102, %s104
      %p111 = scmp.eq.s32.totalorder %s26, 1
      %p112 = por %p110, %p111
      %p113 = scmp.ne.s32.totalorder %s104, %s105
      %p114 = scmp.eq.s32.totalorder %s26, 0
      %p115 = por %p113, %p114
      %p116 = scmp.ne.s32.totalorder %s104, %s105
      %p117 = scmp.eq.s32.totalorder %s27, 1
      %p118 = por %p116, %p117
      %p120 = scmp.ne.s32.totalorder %s105, %s119
      %p121 = scmp.eq.s32.totalorder %s27, 0
      %p122 = por %p120, %p121
      %s124 = sadd.s32 %s123, 1
      %p127 = scmp.eq.s32.totalorder %s21, 1
      %p128 = scmp.ne.s32.totalorder %s123, %s125
      %p129 = scmp.eq.s32.totalorder %s21, 0
      %p130 = por %p128, %p129
      %p131 = scmp.ne.s32.totalorder %s123, %s125
      %p132 = scmp.eq.s32.totalorder %s26, 1
      %p133 = por %p131, %p132
      %p134 = scmp.ne.s32.totalorder %s125, %s126
      %p135 = scmp.eq.s32.totalorder %s26, 0
      %p136 = por %p134, %p135
      %p137 = scmp.ne.s32.totalorder %s125, %s126
      %p138 = scmp.eq.s32.totalorder %s27, 1
      %p139 = por %p137, %p138
      %p141 = scmp.ne.s32.totalorder %s126, %s140
      %p142 = scmp.eq.s32.totalorder %s27, 0
      %p143 = por %p141, %p142
      %s145 = sadd.s32 %s144, 1
      %p148 = scmp.eq.s32.totalorder %s21, 1
      %p149 = scmp.ne.s32.totalorder %s144, %s146
      %p150 = scmp.eq.s32.totalorder %s21, 0
      %p151 = por %p149, %p150
      %p152 = scmp.ne.s32.totalorder %s144, %s146
      %p153 = scmp.eq.s32.totalorder %s26, 1
      %p154 = por %p152, %p153
      %p155 = scmp.ne.s32.totalorder %s146, %s147
      %p156 = scmp.eq.s32.totalorder %s26, 0
      %p157 = por %p155, %p156
      %p158 = scmp.ne.s32.totalorder %s146, %s147
      %p159 = scmp.eq.s32.totalorder %s27, 1
      %p160 = por %p158, %p159
      %p162 = scmp.ne.s32.totalorder %s147, %s161
      %p163 = scmp.eq.s32.totalorder %s27, 0
      %p164 = por %p162, %p163
      %s166 = sadd.s32 %s165, 1
      %p169 = scmp.eq.s32.totalorder %s21, 1
      %p170 = scmp.ne.s32.totalorder %s165, %s167
      %p171 = scmp.eq.s32.totalorder %s21, 0
      %p172 = por %p170, %p171
      %p173 = scmp.ne.s32.totalorder %s165, %s167
      %p174 = scmp.eq.s32.totalorder %s26, 1
      %p175 = por %p173, %p174
      %p176 = scmp.ne.s32.totalorder %s167, %s168
      %p177 = scmp.eq.s32.totalorder %s26, 0
      %p178 = por %p176, %p177
      %p179 = scmp.ne.s32.totalorder %s167, %s168
      %p180 = scmp.eq.s32.totalorder %s27, 1
      %p181 = por %p179, %p180
      %p183 = scmp.ne.s32.totalorder %s168, %s182
      %p184 = scmp.eq.s32.totalorder %s27, 0
      %p185 = por %p183, %p184
      %s187 = sadd.s32 %s186, 1
      %p190 = scmp.eq.s32.totalorder %s21, 1
      %p191 = scmp.ne.s32.totalorder %s186, %s188
      %p192 = scmp.eq.s32.totalorder %s21, 0
      %p193 = por %p191, %p192
      %p194 = scmp.ne.s32.totalorder %s186, %s188
      %p195 = scmp.eq.s32.totalorder %s26, 1
      %p196 = por %p194, %p195
      %p197 = scmp.ne.s32.totalorder %s188, %s189
      %p198 = scmp.eq.s32.totalorder %s26, 0
      %p199 = por %p197, %p198
      %p200 = scmp.ne.s32.totalorder %s188, %s189
      %p201 = scmp.eq.s32.totalorder %s27, 1
      %p202 = por %p200, %p201
      %p204 = scmp.ne.s32.totalorder %s189, %s203
      %p205 = scmp.eq.s32.totalorder %s27, 0
      %p206 = por %p204, %p205
      %s208 = sadd.s32 %s207, 1
      %p211 = scmp.eq.s32.totalorder %s21, 1
      %p212 = scmp.ne.s32.totalorder %s207, %s209
      %p213 = scmp.eq.s32.totalorder %s21, 0
      %p214 = por %p212, %p213
      %p215 = scmp.ne.s32.totalorder %s207, %s209
      %p216 = scmp.eq.s32.totalorder %s26, 1
      %p217 = por %p215, %p216
      %p218 = scmp.ne.s32.totalorder %s209, %s210
      %p219 = scmp.eq.s32.totalorder %s26, 0
      %p220 = por %p218, %p219
      %p221 = scmp.ne.s32.totalorder %s209, %s210
      %p222 = scmp.eq.s32.totalorder %s27, 1
      %p223 = por %p221, %p222
      %p225 = scmp.ne.s32.totalorder %s210, %s224
      %p226 = scmp.eq.s32.totalorder %s27, 0
      %p227 = por %p225, %p226
      %s228 = ssub.s32 %s21, %s28
      %p229 = scmp.eq.s32.totalorder %s228, 0
      %s231 = sadd.s32 %s230, 1
      %s232 = scalar_select %p229, %s230, %s231
      %p235 = pneg %p229
      %p236 = scmp.eq.s32.totalorder %s21, 1
      %p237 = por %p235, %p236
      %p238 = scmp.ne.s32.totalorder %s230, %s233
      %p239 = scmp.eq.s32.totalorder %s21, 0
      %p240 = por %p238, %p239
      %p241 = scmp.ne.s32.totalorder %s230, %s233
      %p242 = scmp.eq.s32.totalorder %s26, 1
      %p243 = por %p241, %p242
      %p244 = scmp.ne.s32.totalorder %s233, %s234
      %p245 = scmp.eq.s32.totalorder %s26, 0
      %p246 = por %p244, %p245
      %p247 = scmp.ne.s32.totalorder %s233, %s234
      %p248 = scmp.eq.s32.totalorder %s27, 1
      %p249 = por %p247, %p248
      %p251 = scmp.ne.s32.totalorder %s234, %s250
      %p252 = scmp.eq.s32.totalorder %s27, 0
      %p253 = por %p251, %p252
      %p254 = scmp.le.s32.totalorder 1, %s21
      %p255 = scmp.lt.s32.totalorder %s21, 3
      %p256 = pnand %p254, %p255
      %p257 = pneg %p256
      // Predicated region
      $region9: #{tpu_custom_call.1} parent=5 // pred_check
        _
      $region10: #{tpu_custom_call.1} parent=5 // pred_check_branch
        %259 = sbr.rel (%p256) target = $region12
      $region11: #{tpu_custom_call.1} parent=5 // pred_region
        %s260 = ssub.s32 %s21, 1
        // Predicated region
        $region13: #{tpu_custom_call.1} parent=11 // pred_check
          %p261 = pneg %p94
        $region14: #{tpu_custom_call.1} parent=11 // pred_check_branch
          %263 = sbr.rel (%p261) target = $region16
        $region15: #{tpu_custom_call.1} parent=11 // pred_region
          %265 = vsyncadd [#allocation4], 0
          %s266 = sshll.u32 %s2, 4
          %s267 = int_to_ptr.hbm [resolvable:$true] %s266
          %s268 = sshll.u32 [#allocation3], 4
          %s269 = int_to_ptr.vmem [resolvable:$true] %s268
          %274 = dma.hbm_to_vmem [thread:$0]  %s267, 512, %s269, [#allocation4], 256, 256, 16
        $region16: #{tpu_custom_call.1} parent=11 // pred_fallthru
          _
        // Predicated region
        $region17: #{tpu_custom_call.1} parent=11 // pred_check
          %p275 = pneg %p115
        $region18: #{tpu_custom_call.1} parent=11 // pred_check_branch
          %277 = sbr.rel (%p275) target = $region20
        $region19: #{tpu_custom_call.1} parent=11 // pred_region
          _
        $region20: #{tpu_custom_call.1} parent=11 // pred_fallthru
          _
        // Predicated region
        $region21: #{tpu_custom_call.1} parent=11 // pred_check
          %p278 = pneg %p136
        $region22: #{tpu_custom_call.1} parent=11 // pred_check_branch
          %280 = sbr.rel (%p278) target = $region24
        $region23: #{tpu_custom_call.1} parent=11 // pred_region
          %282 = vsyncadd [#allocation7], 0
          %s283 = sshll.u32 %s4, 4
          %s284 = int_to_ptr.hbm [resolvable:$true] %s283
          %s285 = sshll.u32 [#allocation6], 4
          %s286 = int_to_ptr.vmem [resolvable:$true] %s285
          %291 = dma.hbm_to_vmem [thread:$0]  %s284, 12288, %s286, [#allocation7], 192, 192, 12
        $region24: #{tpu_custom_call.1} parent=11 // pred_fallthru
          _
        // Predicated region
        $region25: #{tpu_custom_call.1} parent=11 // pred_check
          %p292 = pneg %p157
        $region26: #{tpu_custom_call.1} parent=11 // pred_check_branch
          %294 = sbr.rel (%p292) target = $region28
        $region27: #{tpu_custom_call.1} parent=11 // pred_region
          %296 = vsyncadd [#allocation7], 0
          %s298 = sshll.u32 %s5, 4
          %s299 = int_to_ptr.hbm [resolvable:$true] %s298
          %s300 = sshll.u32 [#allocation8], 4
          %s301 = int_to_ptr.vmem [resolvable:$true] %s300
          %303 = dma.hbm_to_vmem [thread:$0]  %s299, 192, %s301, [#allocation7]
        $region28: #{tpu_custom_call.1} parent=11 // pred_fallthru
          _
        // Predicated region
        $region29: #{tpu_custom_call.1} parent=11 // pred_check
          %p304 = pneg %p178
        $region30: #{tpu_custom_call.1} parent=11 // pred_check_branch
          %306 = sbr.rel (%p304) target = $region32
        $region31: #{tpu_custom_call.1} parent=11 // pred_region
          _
        $region32: #{tpu_custom_call.1} parent=11 // pred_fallthru
          _
        // Predicated region
        $region33: #{tpu_custom_call.1} parent=11 // pred_check
          %p307 = pneg %p199
        $region34: #{tpu_custom_call.1} parent=11 // pred_check_branch
          %309 = sbr.rel (%p307) target = $region36
        $region35: #{tpu_custom_call.1} parent=11 // pred_region
          _
        $region36: #{tpu_custom_call.1} parent=11 // pred_fallthru
          _
        // Predicated region
        $region37: #{tpu_custom_call.1} parent=11 // pred_check
          %p310 = pneg %p220
        $region38: #{tpu_custom_call.1} parent=11 // pred_check_branch
          %312 = sbr.rel (%p310) target = $region40
        $region39: #{tpu_custom_call.1} parent=11 // pred_region
          _
        $region40: #{tpu_custom_call.1} parent=11 // pred_fallthru
          _
      $region12: #{tpu_custom_call.1} parent=5 // pred_fallthru
        _
      %p313 = scmp.lt.s32.totalorder %s21, 2
      // Predicated region
      $region41: #{tpu_custom_call.1} parent=5 // pred_check
        %p314 = pneg %p313
      $region42: #{tpu_custom_call.1} parent=5 // pred_check_branch
        %316 = sbr.rel (%p314) target = $region44
      $region43: #{tpu_custom_call.1} parent=5 // pred_region
        // Predicated region
        $region45: #{tpu_custom_call.1} parent=43 // pred_check
          %p317 = pneg %p41
        $region46: #{tpu_custom_call.1} parent=43 // pred_check_branch
          %319 = sbr.rel (%p317) target = $region48
        $region47: #{tpu_custom_call.1} parent=43 // pred_region
          %p320 = scmp.lt.s32.totalorder %s21, 1
          %s321 = scalar_select %p320, %s21, 1
          %s322 = smul.addr %s321, 8
          %s323 = scalar_lea.vmem %s0, %s322
        $region48: #{tpu_custom_call.1} parent=43 // pred_fallthru
          _
        // Predicated region
        $region49: #{tpu_custom_call.1} parent=43 // pred_check
          %p324 = pneg %p67
        $region50: #{tpu_custom_call.1} parent=43 // pred_check_branch
          %326 = sbr.rel (%p324) target = $region52
        $region51: #{tpu_custom_call.1} parent=43 // pred_region
          %p327 = scmp.lt.s32.totalorder %s21, 1
          %s328 = scalar_select %p327, %s21, 1
          %s329 = smul.addr %s328, 8
          %s330 = scalar_lea.vmem %s1, %s329
        $region52: #{tpu_custom_call.1} parent=43 // pred_fallthru
          _
      $region44: #{tpu_custom_call.1} parent=5 // pred_fallthru
        _
      %p331 = scmp.le.s32.totalorder 1, %s21
      %p332 = scmp.lt.s32.totalorder %s21, 3
      %p333 = pnand %p331, %p332
      %p334 = pneg %p333
      // Predicated region
      $region53: #{tpu_custom_call.1} parent=5 // pred_check
        _
      $region54: #{tpu_custom_call.1} parent=5 // pred_check_branch
        %336 = sbr.rel (%p333) target = $region56
      $region55: #{tpu_custom_call.1} parent=5 // pred_region
        %s337 = ssub.s32 %s21, 1
        // Predicated region
        $region57: #{tpu_custom_call.1} parent=55 // pred_check
          %p338 = pneg %p94
        $region58: #{tpu_custom_call.1} parent=55 // pred_check_branch
          %340 = sbr.rel (%p338) target = $region60
        $region59: #{tpu_custom_call.1} parent=55 // pred_region
          %342 = dma.done [#allocation4], 512
        $region60: #{tpu_custom_call.1} parent=55 // pred_fallthru
          _
        // Predicated region
        $region61: #{tpu_custom_call.1} parent=55 // pred_check
          %p343 = pneg %p136
        $region62: #{tpu_custom_call.1} parent=55 // pred_check_branch
          %345 = sbr.rel (%p343) target = $region64
        $region63: #{tpu_custom_call.1} parent=55 // pred_region
          %347 = dma.done [#allocation7], 12288
        $region64: #{tpu_custom_call.1} parent=55 // pred_fallthru
          _
        // Predicated region
        $region65: #{tpu_custom_call.1} parent=55 // pred_check
          %p348 = pneg %p157
        $region66: #{tpu_custom_call.1} parent=55 // pred_check_branch
          %350 = sbr.rel (%p348) target = $region68
        $region67: #{tpu_custom_call.1} parent=55 // pred_region
          %352 = dma.done [#allocation7], 192
        $region68: #{tpu_custom_call.1} parent=55 // pred_fallthru
          _
        %p353 = scmp.lt.s32.totalorder %s26, 1
        %s354 = scalar_select %p353, %s26, 1
        %s355 = smul.addr %s354, 8
        %s356 = scalar_lea.vmem %s0, %s355
        %p357 = pneg %p47
        %p358 = pneg %p44
        %p359 = scmp.lt.s32.totalorder %s26, 1
        %s360 = scalar_select %p359, %s26, 1
        %s361 = smul.addr %s360, 8
        %s362 = scalar_lea.vmem %s1, %s361
        %p363 = pneg %p73
        %p364 = pneg %p70
        %p365 = pneg %p94
        %p366 = pneg %p91
        %p367 = pneg %p115
        %p368 = pneg %p112
        %p369 = pneg %p136
        %p370 = pneg %p133
        %p371 = pneg %p157
        %p372 = pneg %p154
        %p373 = pneg %p178
        %p374 = pneg %p175
        %p375 = pneg %p199
        %p376 = pneg %p196
        %p377 = pneg %p220
        %p378 = pneg %p217
        %p379 = pneg %p246
        %p380 = pneg %p243
        %s381 = sand.u32 %s233, 1
        %s382 = scalar_lea.sflag [#allocation5], %s381
        %s383 = sand.u32 %s233, 1
        %s384 = scalar_lea.vmem [#allocation9], %s383
        %p385 = scmp.lt.s32.totalorder %s26, 1
        %s386 = scalar_select %p385, %s26, 1
        %s387 = smul.addr %s386, 8
        %s388 = scalar_lea.vmem %s0, %s387
        %p389 = scmp.lt.s32.totalorder %s26, 1
        %s390 = scalar_select %p389, %s26, 1
        %s391 = smul.addr %s390, 8
        %s392 = scalar_lea.vmem %s1, %s391
        %v394 = vld [vmem:[%s388] sm:$0xff]
        %v395 = vpack.c.bf16 %v394, %v394
        %v396 = vld [vmem:[#allocation3] sm:$0xff]
        %v397 = vld [vmem:[#allocation3 + $0x8] sm:$0xff]
        %v398 = vld [vmem:[#allocation3 + $0x10] sm:$0xff]
        %v399 = vld [vmem:[#allocation3 + $0x18] sm:$0xff]
        %v400 = vld [vmem:[%s3] sm:$0xf]
        %v402 = vperm.slane %v400, 0
        %v403 = vperm.slane %v400, 1
        %v404 = vperm.slane %v400, 2
        %v405 = vperm.slane %v400, 3
        %v414 = vunpack.c.l.b16 %v396
        %v415 = vunpack.c.h.b16 %v396
        %v416 = vunpack.c.l.b16 %v397
        %v417 = vunpack.c.h.b16 %v397
        %v418 = vunpack.c.l.b16 %v398
        %v419 = vunpack.c.h.b16 %v398
        %v420 = vunpack.c.l.b16 %v399
        %v421 = vunpack.c.h.b16 %v399
        %v422 = vpack.c.b16 %v418, %v414
        %v423 = vpack.c.b16 %v419, %v415
        %v424 = vpack.c.b16 %v420, %v416
        %v425 = vpack.c.b16 %v421, %v417
        %vm430 = vcmask 130048
        %v432 = vsel %vm430, %v395, 0
        %434 = vmatpush.bf16.msra.mxu0 0
        %435 = vmatpush.bf16.msra.mxu0 0
        %436 = vmatpush.bf16.msra.mxu0 0
        %437 = vmatpush.bf16.msra.mxu0 0
        %438 = vmatpush.bf16.msra.mxu0 0
        %439 = vmatpush.bf16.msra.mxu0 0
        %440 = vmatpush.bf16.msra.mxu0 0
        %441 = vmatpush.bf16.msra.mxu0 %v422
        %442 = vmatmul.bf16.gmra.mxu0 %v432
        %v443 = vpop.f32.mrf.mxu0
        %v444 = vadd.f32 %v402, %v443
        %v445 = vpop.f32.mrf.mxu0
        %446 = vdwg.mxu0
        %447 = vmatpush.bf16.msra.mxu0 0
        %448 = vmatpush.bf16.msra.mxu0 0
        %449 = vmatpush.bf16.msra.mxu0 0
        %450 = vmatpush.bf16.msra.mxu0 0
        %451 = vmatpush.bf16.msra.mxu0 0
        %452 = vmatpush.bf16.msra.mxu0 0
        %453 = vmatpush.bf16.msra.mxu0 0
        %454 = vmatpush.bf16.msra.mxu0 %v423
        %455 = vmatmul.bf16.gmra.mxu0 %v432
        %v456 = vpop.f32.mrf.mxu0
        %v457 = vadd.f32 %v403, %v456
        %v458 = vpop.f32.mrf.mxu0
        %459 = vdwg.mxu0
        %460 = vmatpush.bf16.msra.mxu0 0
        %461 = vmatpush.bf16.msra.mxu0 0
        %462 = vmatpush.bf16.msra.mxu0 0
        %463 = vmatpush.bf16.msra.mxu0 0
        %464 = vmatpush.bf16.msra.mxu0 0
        %465 = vmatpush.bf16.msra.mxu0 0
        %466 = vmatpush.bf16.msra.mxu0 0
        %467 = vmatpush.bf16.msra.mxu0 %v424
        %468 = vmatmul.bf16.gmra.mxu0 %v432
        %v469 = vpop.f32.mrf.mxu0
        %v470 = vadd.f32 %v404, %v469
        %v471 = vpop.f32.mrf.mxu0
        %472 = vdwg.mxu0
        %473 = vmatpush.bf16.msra.mxu0 0
        %474 = vmatpush.bf16.msra.mxu0 0
        %475 = vmatpush.bf16.msra.mxu0 0
        %476 = vmatpush.bf16.msra.mxu0 0
        %477 = vmatpush.bf16.msra.mxu0 0
        %478 = vmatpush.bf16.msra.mxu0 0
        %479 = vmatpush.bf16.msra.mxu0 0
        %480 = vmatpush.bf16.msra.mxu0 %v425
        %481 = vmatmul.bf16.gmra.mxu0 %v432
        %v482 = vpop.f32.mrf.mxu0
        %v483 = vadd.f32 %v405, %v482
        %v484 = vpop.f32.mrf.mxu0
        %485 = vdwg.mxu0
        %v486 = vmax.f32 %v444, 0.0
        %v487 = vmax.f32 %v457, 0.0
        %v488 = vmax.f32 %v470, 0.0
        %v489 = vmax.f32 %v483, 0.0
        %v490 = vpack.c.bf16 %v486, %v486
        %v491 = vpack.c.bf16 %v487, %v487
        %v492 = vpack.c.bf16 %v488, %v488
        %v493 = vpack.c.bf16 %v489, %v489
        %v494 = vld [vmem:[#allocation6] sm:$0xff]
        %v495 = vld [vmem:[#allocation6 + $0x8] sm:$0xf]
        %v496 = vld [vmem:[#allocation6 + $0xc] sm:$0xff]
        %v497 = vld [vmem:[#allocation6 + $0x14] sm:$0xf]
        %v498 = vld [vmem:[#allocation6 + $0x18] sm:$0xff]
        %v499 = vld [vmem:[#allocation6 + $0x20] sm:$0xf]
        %v500 = vld [vmem:[#allocation6 + $0x24] sm:$0xff]
        %v501 = vld [vmem:[#allocation6 + $0x2c] sm:$0xf]
        %v502 = vld [vmem:[#allocation6 + $0x30] sm:$0xff]
        %v503 = vld [vmem:[#allocation6 + $0x38] sm:$0xf]
        %v504 = vld [vmem:[#allocation6 + $0x3c] sm:$0xff]
        %v505 = vld [vmem:[#allocation6 + $0x44] sm:$0xf]
        %v506 = vld [vmem:[#allocation6 + $0x48] sm:$0xff]
        %v507 = vld [vmem:[#allocation6 + $0x50] sm:$0xf]
        %v508 = vld [vmem:[#allocation6 + $0x54] sm:$0xff]
        %v509 = vld [vmem:[#allocation6 + $0x5c] sm:$0xf]
        %v510 = vld [vmem:[#allocation6 + $0x60] sm:$0xff]
        %v511 = vld [vmem:[#allocation6 + $0x68] sm:$0xf]
        %v512 = vld [vmem:[#allocation6 + $0x6c] sm:$0xff]
        %v513 = vld [vmem:[#allocation6 + $0x74] sm:$0xf]
        %v514 = vld [vmem:[#allocation6 + $0x78] sm:$0xff]
        %v515 = vld [vmem:[#allocation6 + $0x80] sm:$0xf]
        %v516 = vld [vmem:[#allocation6 + $0x84] sm:$0xff]
        %v517 = vld [vmem:[#allocation6 + $0x8c] sm:$0xf]
        %v518 = vld [vmem:[#allocation6 + $0x90] sm:$0xff]
        %v519 = vld [vmem:[#allocation6 + $0x98] sm:$0xf]
        %v520 = vld [vmem:[#allocation6 + $0x9c] sm:$0xff]
        %v521 = vld [vmem:[#allocation6 + $0xa4] sm:$0xf]
        %v522 = vld [vmem:[#allocation6 + $0xa8] sm:$0xff]
        %v523 = vld [vmem:[#allocation6 + $0xb0] sm:$0xf]
        %v524 = vld [vmem:[#allocation6 + $0xb4] sm:$0xff]
        %v525 = vld [vmem:[#allocation6 + $0xbc] sm:$0xf]
        %v526 = vld [vmem:[#allocation6 + $0xc0] sm:$0xff]
        %v527 = vld [vmem:[#allocation6 + $0xc8] sm:$0xf]
        %v528 = vld [vmem:[#allocation6 + $0xcc] sm:$0xff]
        %v529 = vld [vmem:[#allocation6 + $0xd4] sm:$0xf]
        %v530 = vld [vmem:[#allocation6 + $0xd8] sm:$0xff]
        %v531 = vld [vmem:[#allocation6 + $0xe0] sm:$0xf]
        %v532 = vld [vmem:[#allocation6 + $0xe4] sm:$0xff]
        %v533 = vld [vmem:[#allocation6 + $0xec] sm:$0xf]
        %v534 = vld [vmem:[#allocation6 + $0xf0] sm:$0xff]
        %v535 = vld [vmem:[#allocation6 + $0xf8] sm:$0xf]
        %v536 = vld [vmem:[#allocation6 + $0xfc] sm:$0xff]
        %v537 = vld [vmem:[#allocation6 + $0x104] sm:$0xf]
        %v538 = vld [vmem:[#allocation6 + $0x108] sm:$0xff]
        %v539 = vld [vmem:[#allocation6 + $0x110] sm:$0xf]
        %v540 = vld [vmem:[#allocation6 + $0x114] sm:$0xff]
        %v541 = vld [vmem:[#allocation6 + $0x11c] sm:$0xf]
        %v542 = vld [vmem:[#allocation6 + $0x120] sm:$0xff]
        %v543 = vld [vmem:[#allocation6 + $0x128] sm:$0xf]
        %v544 = vld [vmem:[#allocation6 + $0x12c] sm:$0xff]
        %v545 = vld [vmem:[#allocation6 + $0x134] sm:$0xf]
        %v546 = vld [vmem:[#allocation6 + $0x138] sm:$0xff]
        %v547 = vld [vmem:[#allocation6 + $0x140] sm:$0xf]
        %v548 = vld [vmem:[#allocation6 + $0x144] sm:$0xff]
        %v549 = vld [vmem:[#allocation6 + $0x14c] sm:$0xf]
        %v550 = vld [vmem:[#allocation6 + $0x150] sm:$0xff]
        %v551 = vld [vmem:[#allocation6 + $0x158] sm:$0xf]
        %v552 = vld [vmem:[#allocation6 + $0x15c] sm:$0xff]
        %v553 = vld [vmem:[#allocation6 + $0x164] sm:$0xf]
        %v554 = vld [vmem:[#allocation6 + $0x168] sm:$0xff]
        %v555 = vld [vmem:[#allocation6 + $0x170] sm:$0xf]
        %v556 = vld [vmem:[#allocation6 + $0x174] sm:$0xff]
        %v557 = vld [vmem:[#allocation6 + $0x17c] sm:$0xf]
        %v558 = vld [vmem:[#allocation6 + $0x180] sm:$0xff]
        %v559 = vld [vmem:[#allocation6 + $0x188] sm:$0xf]
        %v560 = vld [vmem:[#allocation6 + $0x18c] sm:$0xff]
        %v561 = vld [vmem:[#allocation6 + $0x194] sm:$0xf]
        %v562 = vld [vmem:[#allocation6 + $0x198] sm:$0xff]
        %v563 = vld [vmem:[#allocation6 + $0x1a0] sm:$0xf]
        %v564 = vld [vmem:[#allocation6 + $0x1a4] sm:$0xff]
        %v565 = vld [vmem:[#allocation6 + $0x1ac] sm:$0xf]
        %v566 = vld [vmem:[#allocation6 + $0x1b0] sm:$0xff]
        %v567 = vld [vmem:[#allocation6 + $0x1b8] sm:$0xf]
        %v568 = vld [vmem:[#allocation6 + $0x1bc] sm:$0xff]
        %v569 = vld [vmem:[#allocation6 + $0x1c4] sm:$0xf]
        %v570 = vld [vmem:[#allocation6 + $0x1c8] sm:$0xff]
        %v571 = vld [vmem:[#allocation6 + $0x1d0] sm:$0xf]
        %v572 = vld [vmem:[#allocation6 + $0x1d4] sm:$0xff]
        %v573 = vld [vmem:[#allocation6 + $0x1dc] sm:$0xf]
        %v574 = vld [vmem:[#allocation6 + $0x1e0] sm:$0xff]
        %v575 = vld [vmem:[#allocation6 + $0x1e8] sm:$0xf]
        %v576 = vld [vmem:[#allocation6 + $0x1ec] sm:$0xff]
        %v577 = vld [vmem:[#allocation6 + $0x1f4] sm:$0xf]
        %v578 = vld [vmem:[#allocation6 + $0x1f8] sm:$0xff]
        %v579 = vld [vmem:[#allocation6 + $0x200] sm:$0xf]
        %v580 = vld [vmem:[#allocation6 + $0x204] sm:$0xff]
        %v581 = vld [vmem:[#allocation6 + $0x20c] sm:$0xf]
        %v582 = vld [vmem:[#allocation6 + $0x210] sm:$0xff]
        %v583 = vld [vmem:[#allocation6 + $0x218] sm:$0xf]
        %v584 = vld [vmem:[#allocation6 + $0x21c] sm:$0xff]
        %v585 = vld [vmem:[#allocation6 + $0x224] sm:$0xf]
        %v586 = vld [vmem:[#allocation6 + $0x228] sm:$0xff]
        %v587 = vld [vmem:[#allocation6 + $0x230] sm:$0xf]
        %v588 = vld [vmem:[#allocation6 + $0x234] sm:$0xff]
        %v589 = vld [vmem:[#allocation6 + $0x23c] sm:$0xf]
        %v590 = vld [vmem:[#allocation6 + $0x240] sm:$0xff]
        %v591 = vld [vmem:[#allocation6 + $0x248] sm:$0xf]
        %v592 = vld [vmem:[#allocation6 + $0x24c] sm:$0xff]
        %v593 = vld [vmem:[#allocation6 + $0x254] sm:$0xf]
        %v594 = vld [vmem:[#allocation6 + $0x258] sm:$0xff]
        %v595 = vld [vmem:[#allocation6 + $0x260] sm:$0xf]
        %v596 = vld [vmem:[#allocation6 + $0x264] sm:$0xff]
        %v597 = vld [vmem:[#allocation6 + $0x26c] sm:$0xf]
        %v598 = vld [vmem:[#allocation6 + $0x270] sm:$0xff]
        %v599 = vld [vmem:[#allocation6 + $0x278] sm:$0xf]
        %v600 = vld [vmem:[#allocation6 + $0x27c] sm:$0xff]
        %v601 = vld [vmem:[#allocation6 + $0x284] sm:$0xf]
        %v602 = vld [vmem:[#allocation6 + $0x288] sm:$0xff]
        %v603 = vld [vmem:[#allocation6 + $0x290] sm:$0xf]
        %v604 = vld [vmem:[#allocation6 + $0x294] sm:$0xff]
        %v605 = vld [vmem:[#allocation6 + $0x29c] sm:$0xf]
        %v606 = vld [vmem:[#allocation6 + $0x2a0] sm:$0xff]
        %v607 = vld [vmem:[#allocation6 + $0x2a8] sm:$0xf]
        %v608 = vld [vmem:[#allocation6 + $0x2ac] sm:$0xff]
        %v609 = vld [vmem:[#allocation6 + $0x2b4] sm:$0xf]
        %v610 = vld [vmem:[#allocation6 + $0x2b8] sm:$0xff]
        %v611 = vld [vmem:[#allocation6 + $0x2c0] sm:$0xf]
        %v612 = vld [vmem:[#allocation6 + $0x2c4] sm:$0xff]
        %v613 = vld [vmem:[#allocation6 + $0x2cc] sm:$0xf]
        %v614 = vld [vmem:[#allocation6 + $0x2d0] sm:$0xff]
        %v615 = vld [vmem:[#allocation6 + $0x2d8] sm:$0xf]
        %v616 = vld [vmem:[#allocation6 + $0x2dc] sm:$0xff]
        %v617 = vld [vmem:[#allocation6 + $0x2e4] sm:$0xf]
        %v618 = vld [vmem:[#allocation6 + $0x2e8] sm:$0xff]
        %v619 = vld [vmem:[#allocation6 + $0x2f0] sm:$0xf]
        %v620 = vld [vmem:[#allocation6 + $0x2f4] sm:$0xff]
        %v621 = vld [vmem:[#allocation6 + $0x2fc] sm:$0xf]
        %v622 = vld [vmem:[%s6] sm:$0x7]
        %v624 = vperm.slane %v622, 0
        %v625 = vperm.slane %v622, 1
        %v626 = vperm.slane %v622, 2
        %v758 = vunpack.c.l.b16 %v494
        %v759 = vunpack.c.h.b16 %v494
        %v760 = vunpack.c.l.b16 %v495
        %v761 = vunpack.c.l.b16 %v496
        %v762 = vunpack.c.h.b16 %v496
        %v763 = vunpack.c.l.b16 %v497
        %v764 = vunpack.c.l.b16 %v498
        %v765 = vunpack.c.h.b16 %v498
        %v766 = vunpack.c.l.b16 %v499
        %v767 = vunpack.c.l.b16 %v500
        %v768 = vunpack.c.h.b16 %v500
        %v769 = vunpack.c.l.b16 %v501
        %v770 = vunpack.c.l.b16 %v502
        %v771 = vunpack.c.h.b16 %v502
        %v772 = vunpack.c.l.b16 %v503
        %v773 = vunpack.c.l.b16 %v504
        %v774 = vunpack.c.h.b16 %v504
        %v775 = vunpack.c.l.b16 %v505
        %v776 = vunpack.c.l.b16 %v506
        %v777 = vunpack.c.h.b16 %v506
        %v778 = vunpack.c.l.b16 %v507
        %v779 = vunpack.c.l.b16 %v508
        %v780 = vunpack.c.h.b16 %v508
        %v781 = vunpack.c.l.b16 %v509
        %v782 = vunpack.c.l.b16 %v510
        %v783 = vunpack.c.h.b16 %v510
        %v784 = vunpack.c.l.b16 %v511
        %v785 = vunpack.c.l.b16 %v512
        %v786 = vunpack.c.h.b16 %v512
        %v787 = vunpack.c.l.b16 %v513
        %v788 = vunpack.c.l.b16 %v514
        %v789 = vunpack.c.h.b16 %v514
        %v790 = vunpack.c.l.b16 %v515
        %v791 = vunpack.c.l.b16 %v516
        %v792 = vunpack.c.h.b16 %v516
        %v793 = vunpack.c.l.b16 %v517
        %v794 = vunpack.c.l.b16 %v518
        %v795 = vunpack.c.h.b16 %v518
        %v796 = vunpack.c.l.b16 %v519
        %v797 = vunpack.c.l.b16 %v520
        %v798 = vunpack.c.h.b16 %v520
        %v799 = vunpack.c.l.b16 %v521
        %v800 = vunpack.c.l.b16 %v522
        %v801 = vunpack.c.h.b16 %v522
        %v802 = vunpack.c.l.b16 %v523
        %v803 = vunpack.c.l.b16 %v524
        %v804 = vunpack.c.h.b16 %v524
        %v805 = vunpack.c.l.b16 %v525
        %v806 = vunpack.c.l.b16 %v526
        %v807 = vunpack.c.h.b16 %v526
        %v808 = vunpack.c.l.b16 %v527
        %v809 = vunpack.c.l.b16 %v528
        %v810 = vunpack.c.h.b16 %v528
        %v811 = vunpack.c.l.b16 %v529
        %v812 = vunpack.c.l.b16 %v530
        %v813 = vunpack.c.h.b16 %v530
        %v814 = vunpack.c.l.b16 %v531
        %v815 = vunpack.c.l.b16 %v532
        %v816 = vunpack.c.h.b16 %v532
        %v817 = vunpack.c.l.b16 %v533
        %v818 = vunpack.c.l.b16 %v534
        %v819 = vunpack.c.h.b16 %v534
        %v820 = vunpack.c.l.b16 %v535
        %v821 = vunpack.c.l.b16 %v536
        %v822 = vunpack.c.h.b16 %v536
        %v823 = vunpack.c.l.b16 %v537
        %v824 = vunpack.c.l.b16 %v538
        %v825 = vunpack.c.h.b16 %v538
        %v826 = vunpack.c.l.b16 %v539
        %v827 = vunpack.c.l.b16 %v540
        %v828 = vunpack.c.h.b16 %v540
        %v829 = vunpack.c.l.b16 %v541
        %v830 = vunpack.c.l.b16 %v542
        %v831 = vunpack.c.h.b16 %v542
        %v832 = vunpack.c.l.b16 %v543
        %v833 = vunpack.c.l.b16 %v544
        %v834 = vunpack.c.h.b16 %v544
        %v835 = vunpack.c.l.b16 %v545
        %v836 = vunpack.c.l.b16 %v546
        %v837 = vunpack.c.h.b16 %v546
        %v838 = vunpack.c.l.b16 %v547
        %v839 = vunpack.c.l.b16 %v548
        %v840 = vunpack.c.h.b16 %v548
        %v841 = vunpack.c.l.b16 %v549
        %v842 = vunpack.c.l.b16 %v550
        %v843 = vunpack.c.h.b16 %v550
        %v844 = vunpack.c.l.b16 %v551
        %v845 = vunpack.c.l.b16 %v552
        %v846 = vunpack.c.h.b16 %v552
        %v847 = vunpack.c.l.b16 %v553
        %v848 = vunpack.c.l.b16 %v554
        %v849 = vunpack.c.h.b16 %v554
        %v850 = vunpack.c.l.b16 %v555
        %v851 = vunpack.c.l.b16 %v556
        %v852 = vunpack.c.h.b16 %v556
        %v853 = vunpack.c.l.b16 %v557
        %v854 = vunpack.c.l.b16 %v558
        %v855 = vunpack.c.h.b16 %v558
        %v856 = vunpack.c.l.b16 %v559
        %v857 = vunpack.c.l.b16 %v560
        %v858 = vunpack.c.h.b16 %v560
        %v859 = vunpack.c.l.b16 %v561
        %v860 = vunpack.c.l.b16 %v562
        %v861 = vunpack.c.h.b16 %v562
        %v862 = vunpack.c.l.b16 %v563
        %v863 = vunpack.c.l.b16 %v564
        %v864 = vunpack.c.h.b16 %v564
        %v865 = vunpack.c.l.b16 %v565
        %v866 = vunpack.c.l.b16 %v566
        %v867 = vunpack.c.h.b16 %v566
        %v868 = vunpack.c.l.b16 %v567
        %v869 = vunpack.c.l.b16 %v568
        %v870 = vunpack.c.h.b16 %v568
        %v871 = vunpack.c.l.b16 %v569
        %v872 = vunpack.c.l.b16 %v570
        %v873 = vunpack.c.h.b16 %v570
        %v874 = vunpack.c.l.b16 %v571
        %v875 = vunpack.c.l.b16 %v572
        %v876 = vunpack.c.h.b16 %v572
        %v877 = vunpack.c.l.b16 %v573
        %v878 = vunpack.c.l.b16 %v574
        %v879 = vunpack.c.h.b16 %v574
        %v880 = vunpack.c.l.b16 %v575
        %v881 = vunpack.c.l.b16 %v576
        %v882 = vunpack.c.h.b16 %v576
        %v883 = vunpack.c.l.b16 %v577
        %v884 = vunpack.c.l.b16 %v578
        %v885 = vunpack.c.h.b16 %v578
        %v886 = vunpack.c.l.b16 %v579
        %v887 = vunpack.c.l.b16 %v580
        %v888 = vunpack.c.h.b16 %v580
        %v889 = vunpack.c.l.b16 %v581
        %v890 = vunpack.c.l.b16 %v582
        %v891 = vunpack.c.h.b16 %v582
        %v892 = vunpack.c.l.b16 %v583
        %v893 = vunpack.c.l.b16 %v584
        %v894 = vunpack.c.h.b16 %v584
        %v895 = vunpack.c.l.b16 %v585
        %v896 = vunpack.c.l.b16 %v586
        %v897 = vunpack.c.h.b16 %v586
        %v898 = vunpack.c.l.b16 %v587
        %v899 = vunpack.c.l.b16 %v588
        %v900 = vunpack.c.h.b16 %v588
        %v901 = vunpack.c.l.b16 %v589
        %v902 = vunpack.c.l.b16 %v590
        %v903 = vunpack.c.h.b16 %v590
        %v904 = vunpack.c.l.b16 %v591
        %v905 = vunpack.c.l.b16 %v592
        %v906 = vunpack.c.h.b16 %v592
        %v907 = vunpack.c.l.b16 %v593
        %v908 = vunpack.c.l.b16 %v594
        %v909 = vunpack.c.h.b16 %v594
        %v910 = vunpack.c.l.b16 %v595
        %v911 = vunpack.c.l.b16 %v596
        %v912 = vunpack.c.h.b16 %v596
        %v913 = vunpack.c.l.b16 %v597
        %v914 = vunpack.c.l.b16 %v598
        %v915 = vunpack.c.h.b16 %v598
        %v916 = vunpack.c.l.b16 %v599
        %v917 = vunpack.c.l.b16 %v600
        %v918 = vunpack.c.h.b16 %v600
        %v919 = vunpack.c.l.b16 %v601
        %v920 = vunpack.c.l.b16 %v602
        %v921 = vunpack.c.h.b16 %v602
        %v922 = vunpack.c.l.b16 %v603
        %v923 = vunpack.c.l.b16 %v604
        %v924 = vunpack.c.h.b16 %v604
        %v925 = vunpack.c.l.b16 %v605
        %v926 = vunpack.c.l.b16 %v606
        %v927 = vunpack.c.h.b16 %v606
        %v928 = vunpack.c.l.b16 %v607
        %v929 = vunpack.c.l.b16 %v608
        %v930 = vunpack.c.h.b16 %v608
        %v931 = vunpack.c.l.b16 %v609
        %v932 = vunpack.c.l.b16 %v610
        %v933 = vunpack.c.h.b16 %v610
        %v934 = vunpack.c.l.b16 %v611
        %v935 = vunpack.c.l.b16 %v612
        %v936 = vunpack.c.h.b16 %v612
        %v937 = vunpack.c.l.b16 %v613
        %v938 = vunpack.c.l.b16 %v614
        %v939 = vunpack.c.h.b16 %v614
        %v940 = vunpack.c.l.b16 %v615
        %v941 = vunpack.c.l.b16 %v616
        %v942 = vunpack.c.h.b16 %v616
        %v943 = vunpack.c.l.b16 %v617
        %v944 = vunpack.c.l.b16 %v618
        %v945 = vunpack.c.h.b16 %v618
        %v946 = vunpack.c.l.b16 %v619
        %v947 = vunpack.c.l.b16 %v620
        %v948 = vunpack.c.h.b16 %v620
        %v949 = vunpack.c.l.b16 %v621
        %v950 = vpack.c.b16 %v761, %v758
        %v951 = vpack.c.b16 %v762, %v759
        %v952 = vpack.c.b16 %v763, %v760
        %v953 = vpack.c.b16 %v767, %v764
        %v954 = vpack.c.b16 %v768, %v765
        %v955 = vpack.c.b16 %v769, %v766
        %v956 = vpack.c.b16 %v773, %v770
        %v957 = vpack.c.b16 %v774, %v771
        %v958 = vpack.c.b16 %v775, %v772
        %v959 = vpack.c.b16 %v779, %v776
        %v960 = vpack.c.b16 %v780, %v777
        %v961 = vpack.c.b16 %v781, %v778
        %v962 = vpack.c.b16 %v785, %v782
        %v963 = vpack.c.b16 %v786, %v783
        %v964 = vpack.c.b16 %v787, %v784
        %v965 = vpack.c.b16 %v791, %v788
        %v966 = vpack.c.b16 %v792, %v789
        %v967 = vpack.c.b16 %v793, %v790
        %v968 = vpack.c.b16 %v797, %v794
        %v969 = vpack.c.b16 %v798, %v795
        %v970 = vpack.c.b16 %v799, %v796
        %v971 = vpack.c.b16 %v803, %v800
        %v972 = vpack.c.b16 %v804, %v801
        %v973 = vpack.c.b16 %v805, %v802
        %v974 = vpack.c.b16 %v809, %v806
        %v975 = vpack.c.b16 %v810, %v807
        %v976 = vpack.c.b16 %v811, %v808
        %v977 = vpack.c.b16 %v815, %v812
        %v978 = vpack.c.b16 %v816, %v813
        %v979 = vpack.c.b16 %v817, %v814
        %v980 = vpack.c.b16 %v821, %v818
        %v981 = vpack.c.b16 %v822, %v819
        %v982 = vpack.c.b16 %v823, %v820
        %v983 = vpack.c.b16 %v827, %v824
        %v984 = vpack.c.b16 %v828, %v825
        %v985 = vpack.c.b16 %v829, %v826
        %v986 = vpack.c.b16 %v833, %v830
        %v987 = vpack.c.b16 %v834, %v831
        %v988 = vpack.c.b16 %v835, %v832
        %v989 = vpack.c.b16 %v839, %v836
        %v990 = vpack.c.b16 %v840, %v837
        %v991 = vpack.c.b16 %v841, %v838
        %v992 = vpack.c.b16 %v845, %v842
        %v993 = vpack.c.b16 %v846, %v843
        %v994 = vpack.c.b16 %v847, %v844
        %v995 = vpack.c.b16 %v851, %v848
        %v996 = vpack.c.b16 %v852, %v849
        %v997 = vpack.c.b16 %v853, %v850
        %v998 = vpack.c.b16 %v857, %v854
        %v999 = vpack.c.b16 %v858, %v855
        %v1000 = vpack.c.b16 %v859, %v856
        %v1001 = vpack.c.b16 %v863, %v860
        %v1002 = vpack.c.b16 %v864, %v861
        %v1003 = vpack.c.b16 %v865, %v862
        %v1004 = vpack.c.b16 %v869, %v866
        %v1005 = vpack.c.b16 %v870, %v867
        %v1006 = vpack.c.b16 %v871, %v868
        %v1007 = vpack.c.b16 %v875, %v872
        %v1008 = vpack.c.b16 %v876, %v873
        %v1009 = vpack.c.b16 %v877, %v874
        %v1010 = vpack.c.b16 %v881, %v878
        %v1011 = vpack.c.b16 %v882, %v879
        %v1012 = vpack.c.b16 %v883, %v880
        %v1013 = vpack.c.b16 %v887, %v884
        %v1014 = vpack.c.b16 %v888, %v885
        %v1015 = vpack.c.b16 %v889, %v886
        %v1016 = vpack.c.b16 %v893, %v890
        %v1017 = vpack.c.b16 %v894, %v891
        %v1018 = vpack.c.b16 %v895, %v892
        %v1019 = vpack.c.b16 %v899, %v896
        %v1020 = vpack.c.b16 %v900, %v897
        %v1021 = vpack.c.b16 %v901, %v898
        %v1022 = vpack.c.b16 %v905, %v902
        %v1023 = vpack.c.b16 %v906, %v903
        %v1024 = vpack.c.b16 %v907, %v904
        %v1025 = vpack.c.b16 %v911, %v908
        %v1026 = vpack.c.b16 %v912, %v909
        %v1027 = vpack.c.b16 %v913, %v910
        %v1028 = vpack.c.b16 %v917, %v914
        %v1029 = vpack.c.b16 %v918, %v915
        %v1030 = vpack.c.b16 %v919, %v916
        %v1031 = vpack.c.b16 %v923, %v920
        %v1032 = vpack.c.b16 %v924, %v921
        %v1033 = vpack.c.b16 %v925, %v922
        %v1034 = vpack.c.b16 %v929, %v926
        %v1035 = vpack.c.b16 %v930, %v927
        %v1036 = vpack.c.b16 %v931, %v928
        %v1037 = vpack.c.b16 %v935, %v932
        %v1038 = vpack.c.b16 %v936, %v933
        %v1039 = vpack.c.b16 %v937, %v934
        %v1040 = vpack.c.b16 %v941, %v938
        %v1041 = vpack.c.b16 %v942, %v939
        %v1042 = vpack.c.b16 %v943, %v940
        %v1043 = vpack.c.b16 %v947, %v944
        %v1044 = vpack.c.b16 %v948, %v945
        %v1045 = vpack.c.b16 %v949, %v946
        %1142 = vmatpush.bf16.msra.mxu0 %v971
        %1143 = vmatpush.bf16.msra.mxu0 %v968
        %1144 = vmatpush.bf16.msra.mxu0 %v965
        %1145 = vmatpush.bf16.msra.mxu0 %v962
        %1146 = vmatpush.bf16.msra.mxu0 %v959
        %1147 = vmatpush.bf16.msra.mxu0 %v956
        %1148 = vmatpush.bf16.msra.mxu0 %v953
        %1149 = vmatpush.bf16.msra.mxu0 %v950
        %1150 = vmatmul.bf16.gmra.mxu0 %v490
        %v1151 = vpop.f32.mrf.mxu0
        %v1152 = vadd.f32 %v624, %v1151
        %v1153 = vpop.f32.mrf.mxu0
        %1154 = vdwg.mxu0
        %1155 = vmatpush.bf16.msra.mxu0 %v995
        %1156 = vmatpush.bf16.msra.mxu0 %v992
        %1157 = vmatpush.bf16.msra.mxu0 %v989
        %1158 = vmatpush.bf16.msra.mxu0 %v986
        %1159 = vmatpush.bf16.msra.mxu0 %v983
        %1160 = vmatpush.bf16.msra.mxu0 %v980
        %1161 = vmatpush.bf16.msra.mxu0 %v977
        %1162 = vmatpush.bf16.msra.mxu0 %v974
        %1163 = vmatmul.bf16.gmra.mxu0 %v491
        %v1164 = vpop.f32.mrf.mxu0
        %v1165 = vadd.f32 %v1152, %v1164
        %v1166 = vpop.f32.mrf.mxu0
        %1167 = vdwg.mxu0
        %1168 = vmatpush.bf16.msra.mxu0 %v1019
        %1169 = vmatpush.bf16.msra.mxu0 %v1016
        %1170 = vmatpush.bf16.msra.mxu0 %v1013
        %1171 = vmatpush.bf16.msra.mxu0 %v1010
        %1172 = vmatpush.bf16.msra.mxu0 %v1007
        %1173 = vmatpush.bf16.msra.mxu0 %v1004
        %1174 = vmatpush.bf16.msra.mxu0 %v1001
        %1175 = vmatpush.bf16.msra.mxu0 %v998
        %1176 = vmatmul.bf16.gmra.mxu0 %v492
        %v1177 = vpop.f32.mrf.mxu0
        %v1178 = vadd.f32 %v1165, %v1177
        %v1179 = vpop.f32.mrf.mxu0
        %1180 = vdwg.mxu0
        %1181 = vmatpush.bf16.msra.mxu0 %v1043
        %1182 = vmatpush.bf16.msra.mxu0 %v1040
        %1183 = vmatpush.bf16.msra.mxu0 %v1037
        %1184 = vmatpush.bf16.msra.mxu0 %v1034
        %1185 = vmatpush.bf16.msra.mxu0 %v1031
        %1186 = vmatpush.bf16.msra.mxu0 %v1028
        %1187 = vmatpush.bf16.msra.mxu0 %v1025
        %1188 = vmatpush.bf16.msra.mxu0 %v1022
        %1189 = vmatmul.bf16.gmra.mxu0 %v493
        %v1190 = vpop.f32.mrf.mxu0
        %v1191 = vadd.f32 %v1178, %v1190
        %v1192 = vpop.f32.mrf.mxu0
        %1193 = vdwg.mxu0
        %1194 = vmatpush.bf16.msra.mxu0 %v972
        %1195 = vmatpush.bf16.msra.mxu0 %v969
        %1196 = vmatpush.bf16.msra.mxu0 %v966
        %1197 = vmatpush.bf16.msra.mxu0 %v963
        %1198 = vmatpush.bf16.msra.mxu0 %v960
        %1199 = vmatpush.bf16.msra.mxu0 %v957
        %1200 = vmatpush.bf16.msra.mxu0 %v954
        %1201 = vmatpush.bf16.msra.mxu0 %v951
        %1202 = vmatmul.bf16.gmra.mxu0 %v490
        %v1203 = vpop.f32.mrf.mxu0
        %v1204 = vadd.f32 %v625, %v1203
        %v1205 = vpop.f32.mrf.mxu0
        %1206 = vdwg.mxu0
        %1207 = vmatpush.bf16.msra.mxu0 %v996
        %1208 = vmatpush.bf16.msra.mxu0 %v993
        %1209 = vmatpush.bf16.msra.mxu0 %v990
        %1210 = vmatpush.bf16.msra.mxu0 %v987
        %1211 = vmatpush.bf16.msra.mxu0 %v984
        %1212 = vmatpush.bf16.msra.mxu0 %v981
        %1213 = vmatpush.bf16.msra.mxu0 %v978
        %1214 = vmatpush.bf16.msra.mxu0 %v975
        %1215 = vmatmul.bf16.gmra.mxu0 %v491
        %v1216 = vpop.f32.mrf.mxu0
        %v1217 = vadd.f32 %v1204, %v1216
        %v1218 = vpop.f32.mrf.mxu0
        %1219 = vdwg.mxu0
        %1220 = vmatpush.bf16.msra.mxu0 %v1020
        %1221 = vmatpush.bf16.msra.mxu0 %v1017
        %1222 = vmatpush.bf16.msra.mxu0 %v1014
        %1223 = vmatpush.bf16.msra.mxu0 %v1011
        %1224 = vmatpush.bf16.msra.mxu0 %v1008
        %1225 = vmatpush.bf16.msra.mxu0 %v1005
        %1226 = vmatpush.bf16.msra.mxu0 %v1002
        %1227 = vmatpush.bf16.msra.mxu0 %v999
        %1228 = vmatmul.bf16.gmra.mxu0 %v492
        %v1229 = vpop.f32.mrf.mxu0
        %v1230 = vadd.f32 %v1217, %v1229
        %v1231 = vpop.f32.mrf.mxu0
        %1232 = vdwg.mxu0
        %1233 = vmatpush.bf16.msra.mxu0 %v1044
        %1234 = vmatpush.bf16.msra.mxu0 %v1041
        %1235 = vmatpush.bf16.msra.mxu0 %v1038
        %1236 = vmatpush.bf16.msra.mxu0 %v1035
        %1237 = vmatpush.bf16.msra.mxu0 %v1032
        %1238 = vmatpush.bf16.msra.mxu0 %v1029
        %1239 = vmatpush.bf16.msra.mxu0 %v1026
        %1240 = vmatpush.bf16.msra.mxu0 %v1023
        %1241 = vmatmul.bf16.gmra.mxu0 %v493
        %v1242 = vpop.f32.mrf.mxu0
        %v1243 = vadd.f32 %v1230, %v1242
        %v1244 = vpop.f32.mrf.mxu0
        %1245 = vdwg.mxu0
        %1246 = vmatpush.bf16.msra.mxu0 %v973
        %1247 = vmatpush.bf16.msra.mxu0 %v970
        %1248 = vmatpush.bf16.msra.mxu0 %v967
        %1249 = vmatpush.bf16.msra.mxu0 %v964
        %1250 = vmatpush.bf16.msra.mxu0 %v961
        %1251 = vmatpush.bf16.msra.mxu0 %v958
        %1252 = vmatpush.bf16.msra.mxu0 %v955
        %1253 = vmatpush.bf16.msra.mxu0 %v952
        %1254 = vmatmul.bf16.gmra.mxu0 %v490
        %v1255 = vpop.f32.mrf.mxu0
        %v1256 = vadd.f32 %v626, %v1255
        %v1257 = vpop.f32.mrf.mxu0
        %1258 = vdwg.mxu0
        %1259 = vmatpush.bf16.msra.mxu0 %v997
        %1260 = vmatpush.bf16.msra.mxu0 %v994
        %1261 = vmatpush.bf16.msra.mxu0 %v991
        %1262 = vmatpush.bf16.msra.mxu0 %v988
        %1263 = vmatpush.bf16.msra.mxu0 %v985
        %1264 = vmatpush.bf16.msra.mxu0 %v982
        %1265 = vmatpush.bf16.msra.mxu0 %v979
        %1266 = vmatpush.bf16.msra.mxu0 %v976
        %1267 = vmatmul.bf16.gmra.mxu0 %v491
        %v1268 = vpop.f32.mrf.mxu0
        %v1269 = vadd.f32 %v1256, %v1268
        %v1270 = vpop.f32.mrf.mxu0
        %1271 = vdwg.mxu0
        %1272 = vmatpush.bf16.msra.mxu0 %v1021
        %1273 = vmatpush.bf16.msra.mxu0 %v1018
        %1274 = vmatpush.bf16.msra.mxu0 %v1015
        %1275 = vmatpush.bf16.msra.mxu0 %v1012
        %1276 = vmatpush.bf16.msra.mxu0 %v1009
        %1277 = vmatpush.bf16.msra.mxu0 %v1006
        %1278 = vmatpush.bf16.msra.mxu0 %v1003
        %1279 = vmatpush.bf16.msra.mxu0 %v1000
        %1280 = vmatmul.bf16.gmra.mxu0 %v492
        %v1281 = vpop.f32.mrf.mxu0
        %v1282 = vadd.f32 %v1269, %v1281
        %v1283 = vpop.f32.mrf.mxu0
        %1284 = vdwg.mxu0
        %1285 = vmatpush.bf16.msra.mxu0 %v1045
        %1286 = vmatpush.bf16.msra.mxu0 %v1042
        %1287 = vmatpush.bf16.msra.mxu0 %v1039
        %1288 = vmatpush.bf16.msra.mxu0 %v1036
        %1289 = vmatpush.bf16.msra.mxu0 %v1033
        %1290 = vmatpush.bf16.msra.mxu0 %v1030
        %1291 = vmatpush.bf16.msra.mxu0 %v1027
        %1292 = vmatpush.bf16.msra.mxu0 %v1024
        %1293 = vmatmul.bf16.gmra.mxu0 %v493
        %v1294 = vpop.f32.mrf.mxu0
        %v1295 = vadd.f32 %v1282, %v1294
        %v1296 = vpop.f32.mrf.mxu0
        %1297 = vdwg.mxu0
        %v1298 = vld [vmem:[%s392] sm:$0xff]
        %v1299 = vld [vmem:[#allocation8] sm:$0xff]
        %v1300 = vld [vmem:[#allocation8 + $0x8] sm:$0xf]
        %1302 = vset.pattern.permute.xlu0 0
        %1303 = vperm.xlu0 %1302, %v1298
        %v1304 = vpop.permute.xlu0 %1303
        %v1308 = vperm.slane %v1299, 0
        %v1309 = vperm.slane %v1299, 4
        %v1310 = vperm.slane %v1300, 0
        %v1314 = vperm.slane %v1308, 0
        %v1315 = vperm.slane %v1309, 0
        %v1316 = vperm.slane %v1310, 0
        %v1317 = vmul.f32 %v1304, %v1314
        %v1318 = vmul.f32 %v1304, %v1315
        %v1319 = vmul.f32 %v1304, %v1316
        %v1320 = vadd.f32 %v1191, %v1317
        %v1321 = vadd.f32 %v1243, %v1318
        %v1322 = vadd.f32 %v1295, %v1319
        %1323 = vset.pattern.permute.xlu0 1
        %1324 = vperm.xlu0 %1323, %v1298
        %v1325 = vpop.permute.xlu0 %1324
        %v1327 = vperm.slane %v1299, 1
        %v1328 = vperm.slane %v1299, 5
        %v1329 = vperm.slane %v1300, 1
        %v1333 = vperm.slane %v1327, 1
        %v1334 = vperm.slane %v1328, 1
        %v1335 = vperm.slane %v1329, 1
        %v1336 = vmul.f32 %v1325, %v1333
        %v1337 = vmul.f32 %v1325, %v1334
        %v1338 = vmul.f32 %v1325, %v1335
        %v1339 = vadd.f32 %v1320, %v1336
        %v1340 = vadd.f32 %v1321, %v1337
        %v1341 = vadd.f32 %v1322, %v1338
        %1342 = vset.pattern.permute.xlu0 2
        %1343 = vperm.xlu0 %1342, %v1298
        %v1344 = vpop.permute.xlu0 %1343
        %v1346 = vperm.slane %v1299, 2
        %v1347 = vperm.slane %v1299, 6
        %v1348 = vperm.slane %v1300, 2
        %v1352 = vperm.slane %v1346, 2
        %v1353 = vperm.slane %v1347, 2
        %v1354 = vperm.slane %v1348, 2
        %v1355 = vmul.f32 %v1344, %v1352
        %v1356 = vmul.f32 %v1344, %v1353
        %v1357 = vmul.f32 %v1344, %v1354
        %v1358 = vadd.f32 %v1339, %v1355
        %v1359 = vadd.f32 %v1340, %v1356
        %v1360 = vadd.f32 %v1341, %v1357
        %1361 = vset.pattern.permute.xlu0 3
        %1362 = vperm.xlu0 %1361, %v1298
        %v1363 = vpop.permute.xlu0 %1362
        %v1365 = vperm.slane %v1299, 3
        %v1366 = vperm.slane %v1299, 7
        %v1367 = vperm.slane %v1300, 3
        %v1371 = vperm.slane %v1365, 3
        %v1372 = vperm.slane %v1366, 3
        %v1373 = vperm.slane %v1367, 3
        %v1374 = vmul.f32 %v1363, %v1371
        %v1375 = vmul.f32 %v1363, %v1372
        %v1376 = vmul.f32 %v1363, %v1373
        %v1377 = vadd.f32 %v1358, %v1374
        %v1378 = vadd.f32 %v1359, %v1375
        %v1379 = vadd.f32 %v1360, %v1376
        %v1380 = vmax.f32 %v1377, 0.0
        %v1381 = vmax.f32 %v1378, 0.0
        %v1382 = vmax.f32 %v1379, 0.0
        %v1383 = vld [vmem:[%s7] sm:$0x7]
        %v1385 = vperm.slane %v1383, 0
        %v1386 = vperm.slane %v1383, 1
        %v1387 = vperm.slane %v1383, 2
        %v1391 = vmul.f32 %v1380, %v1385
        %v1392 = vmul.f32 %v1381, %v1386
        %v1393 = vmul.f32 %v1382, %v1387
        %v1394 = vadd.f32 %v1391, %v1392
        %v1395 = vadd.f32 %v1394, %v1393
        %1396 = vadd.xlane.f32.xlu0 %v1395
        %v1397 = vpop.xlane.xlu0 %1396
        %s1398 = sld [smem:[#allocation2]]
        %v1399 = vstv %s1398
        %v1400 = vadd.f32 %v1397, %v1399
        %v1401 = vmax.f32 %v1400, 0.0
        %v1403 = vlaneseq
        %v1404 = vand.u32 %v1403, 127
        %v1405 = vperm.slane %v1401, %v1404
        %vm1407 = vcmask 57344
        %1408 = vst.msk [vmem:[%s384] sm:$0x1] %vm1407, %v1405
        %s1409 = sand.u32 %s233, 1
        %s1410 = scalar_lea.sflag [#allocation5], %s1409
        %s1411 = sand.u32 %s233, 1
        %s1412 = scalar_lea.vmem [#allocation9], %s1411
        // Predicated region
        $region69: #{tpu_custom_call.1} parent=55 // pred_check
          %p1413 = pneg %p243
        $region70: #{tpu_custom_call.1} parent=55 // pred_check_branch
          %1415 = sbr.rel (%p1413) target = $region72
        $region71: #{tpu_custom_call.1} parent=55 // pred_region
          %1417 = vsyncadd %s1410, 0
          %s1418 = scalar_lea.hbm %s9, %s26
          %s1420 = sshll.u32 %s1412, 4
          %s1421 = int_to_ptr.vmem [resolvable:$true] %s1420
          %s1422 = sshll.u32 %s1418, 4
          %s1423 = int_to_ptr.hbm [resolvable:$true] %s1422
          %1425 = dma.vmem_to_hbm [thread:$0]  %s1421, 16, %s1423, %s1410
        $region72: #{tpu_custom_call.1} parent=55 // pred_fallthru
          _
      $region56: #{tpu_custom_call.1} parent=5 // pred_fallthru
        _
      %p1426 = scmp.le.s32.totalorder 2, %s21
      // Predicated region
      $region73: #{tpu_custom_call.1} parent=5 // pred_check
        %p1427 = pneg %p1426
      $region74: #{tpu_custom_call.1} parent=5 // pred_check_branch
        %1429 = sbr.rel (%p1427) target = $region76
      $region75: #{tpu_custom_call.1} parent=5 // pred_region
        %s1430 = ssub.s32 %s21, 2
        // Predicated region
        $region77: #{tpu_custom_call.1} parent=75 // pred_check
          %p1431 = pneg %p249
        $region78: #{tpu_custom_call.1} parent=75 // pred_check_branch
          %1433 = sbr.rel (%p1431) target = $region80
        $region79: #{tpu_custom_call.1} parent=75 // pred_region
          %s1434 = sand.u32 %s234, 1
          %s1435 = scalar_lea.sflag [#allocation5], %s1434
          %s1436 = sand.u32 %s234, 1
          %s1437 = scalar_lea.vmem [#allocation9], %s1436
          %1439 = dma.done %s1435, 16
        $region80: #{tpu_custom_call.1} parent=75 // pred_fallthru
          _
      $region76: #{tpu_custom_call.1} parent=5 // pred_fallthru
        _
    $region6: #{tpu_custom_call.1} parent=1 // loop_footer
      %s25 = sadd.s32 1, %s21
    $region7: #{tpu_custom_call.1} parent=1 // loop_footer_branch
      %20 = sbr.rel target = $region3
    $region8: #{tpu_custom_call.1} parent=1 // loop_exit
      _
    %1440 = vsyncpa [#allocation4], 1
    %s1441 = scalar_lea.sflag [#allocation4], 1
    %1442 = vsyncpa %s1441, 1
    %1443 = vsyncpa [#allocation7], 1
    %1444 = vsyncpa [#allocation5], 1
    %s1445 = scalar_lea.sflag [#allocation5], 1
    %1446 = vsyncpa %s1445, 1

</llo_original>
